<compile_context>
chip_gen: v7x
topology: tpu7x:2x2x1
jax: 0.10.0
libtpu: 0.0.40
codegen_flags: <defaults>
</compile_context>

<pallas_src>
import functools

import jax
import jax.numpy as jnp
from jax.experimental import pallas as pl
from jax.experimental.pallas import tpu as pltpu

INPUT_SIZE = 4          # forced by cat((temp, x), dim=1) feeding fc7(hidden+4)
HIDDEN_SIZE = 27        # hard-coded in __init__
OUTPUT_SIZE = 1


def _mlp_kernel(x_ref,                      # (INPUT_SIZE, TILE_B)   batch on lanes
                w1_ref, b1_ref,             # (H, INPUT), (H, 1)
                w4_ref, b4_ref,             # (H, H),     (H, 1)
                w5_ref, b5_ref,
                w6_ref, b6_ref,
                w7a_ref, w7b_ref, b7_ref,   # fc7 split: (H, INPUT), (H, H), (H, 1)
                w2_ref, b2_ref,             # (H, 1), (1, 1)
                o_ref):                     # (1, TILE_B)  lane-dense output row
    xT = x_ref[...]                         # batch along the lane axis

    def layer(w_ref, b_ref, h):
        z = jnp.dot(w_ref[...], h, preferred_element_type=jnp.float32) + b_ref[...]
        return jnp.maximum(z, 0.0)

    h = layer(w1_ref, b1_ref, xT)           # fc1 + relu   -> (H, TILE_B)
    h = layer(w4_ref, b4_ref, h)            # fc4 + relu
    h = layer(w5_ref, b5_ref, h)            # fc5 + relu
    h = layer(w6_ref, b6_ref, h)            # fc6 + relu

    # fc7 over concat([temp, h], axis=features) folded into two MXU matmuls:
    # no cross-lane concat / odd 31-row weight tile.
    z = (jnp.dot(w7a_ref[...], xT, preferred_element_type=jnp.float32)
         + jnp.dot(w7b_ref[...], h, preferred_element_type=jnp.float32)
         + b7_ref[...])
    h = jnp.maximum(z, 0.0)                 # (H, TILE_B)

    # fc2 (27 -> 1): VPU multiply + cross-sublane reduce -> lane-dense row,
    # instead of a 1-wide MXU matmul followed by masked stores.
    o_ref[...] = jnp.sum(h * w2_ref[...], axis=0, keepdims=True) + b2_ref[...]


@functools.partial(jax.jit, static_argnames=("tile_b",))
def nn_forward(x, params, tile_b=512):
    """x: (B, INPUT_SIZE) float32. Returns the same result as the torch module."""
    B = x.shape[0]

    # Lane-dense batch tiling: tiles are multiples of 128 lanes.
    tile_b = max(128, (tile_b // 128) * 128)
    b_pad = pl.cdiv(B, 128) * 128
    tile_b = min(tile_b, b_pad)
    b_pad = pl.cdiv(b_pad, tile_b) * tile_b
    num_tiles = b_pad // tile_b

    # Put the batch on the lane (last) axis: pad + transpose in the wrapper.
    # This is layout plumbing only; all compute stays inside the kernel.
    x_t = jnp.pad(x, ((0, b_pad - B), (0, 0))).T            # (INPUT_SIZE, b_pad)

    def wt(name):    # weights in (out, in) layout so the kernel computes W @ h
        return params[name][0].T

    def bc(name):    # bias as an (out, 1) column -> broadcasts along lanes
        return params[name][1].reshape(-1, 1)

    w7 = params["fc7"][0]                                   # (INPUT+H, H); rows = [temp; h]
    w7a = w7[:INPUT_SIZE].T                                 # (H, INPUT)
    w7b = w7[INPUT_SIZE:].T                                 # (H, H)

    args = (
        x_t,
        wt("fc1"), bc("fc1"),
        wt("fc4"), bc("fc4"),
        wt("fc5"), bc("fc5"),
        wt("fc6"), bc("fc6"),
        w7a, w7b, bc("fc7"),
        params["fc2"][0],                                   # (H, 1)
        params["fc2"][1].reshape(1, 1),                     # (1, 1)
    )

    def resident(a):
        # Full-array block with a constant index_map: same block every grid
        # step, so the weight/bias is DMA'd into VMEM once and stays resident.
        return pl.BlockSpec(a.shape, lambda i: (0, 0))

    in_specs = [pl.BlockSpec((INPUT_SIZE, tile_b), lambda i: (0, i))]
    in_specs += [resident(a) for a in args[1:]]

    out = pl.pallas_call(
        _mlp_kernel,
        out_shape=jax.ShapeDtypeStruct((1, b_pad), jnp.float32),
        grid_spec=pltpu.PrefetchScalarGridSpec(
            num_scalar_prefetch=0,
            grid=(num_tiles,),
            in_specs=in_specs,
            out_specs=pl.BlockSpec((1, tile_b), lambda i: (0, i)),
        ),
        compiler_params=pltpu.CompilerParams(
            dimension_semantics=("parallel",)),
    )(*args)

    out = out[0, :B]                     # drop batch padding -> (B,)
    return jnp.squeeze(out)              # matches torch `.squeeze()`


def init_linear(key, fan_in, fan_out):
    """Deterministic init mimicking torch.nn.Linear default (uniform +-1/sqrt(fan_in))."""
    kw, kb = jax.random.split(key)
    bound = 1.0 / jnp.sqrt(jnp.float32(fan_in))
    w = jax.random.uniform(kw, (fan_in, fan_out), jnp.float32, -bound, bound)
    b = jax.random.uniform(kb, (fan_out,), jnp.float32, -bound, bound)
    return w, b


if __name__ == "__main__":
    key = jax.random.PRNGKey(0)
    keys = jax.random.split(key, 7)

    params = {
        "fc1": init_linear(keys[0], INPUT_SIZE, HIDDEN_SIZE),
        "fc4": init_linear(keys[1], HIDDEN_SIZE, HIDDEN_SIZE),
        "fc5": init_linear(keys[2], HIDDEN_SIZE, HIDDEN_SIZE),
        "fc6": init_linear(keys[3], HIDDEN_SIZE, HIDDEN_SIZE),
        "fc7": init_linear(keys[4], HIDDEN_SIZE + INPUT_SIZE, HIDDEN_SIZE),
        "fc2": init_linear(keys[5], HIDDEN_SIZE, OUTPUT_SIZE),
    }

    B = 200                                    # not a multiple of the tile: exercises padding
    x = jax.random.normal(keys[6], (B, INPUT_SIZE), jnp.float32)

    out = nn_forward(x, params, tile_b=128)    # small tile -> multi-step grid in the demo
    jax.block_until_ready(out)

    # lightweight correctness check against a pure-JAX reference
    def ref(x, params):
        temp = x
        h = x
        for name in ("fc1", "fc4", "fc5", "fc6"):
            w, b = params[name]
            h = jnp.maximum(h @ w + b, 0.0)
        h = jnp.concatenate([temp, h], axis=1)
        w, b = params["fc7"]
        h = jnp.maximum(h @ w + b, 0.0)
        w, b = params["fc2"]
        return jnp.squeeze(h @ w + b)

    expected = ref(x, params)
    assert out.shape == expected.shape, (out.shape, expected.shape)
    assert jnp.allclose(out, expected, atol=1e-4, rtol=1e-4), \
        float(jnp.max(jnp.abs(out - expected)))

    print("KERNEL_OK")
</pallas_src>

<mosaic_0001>
module attributes {stable_mosaic.version = 11 : i64} {
  func.func @_mlp_kernel(%arg0: i32, %arg1: memref<4x128xf32, #tpu.memory_space<vmem>>, %arg2: memref<27x4xf32, #tpu.memory_space<vmem>>, %arg3: memref<27x1xf32, #tpu.memory_space<vmem>>, %arg4: memref<27x27xf32, #tpu.memory_space<vmem>>, %arg5: memref<27x1xf32, #tpu.memory_space<vmem>>, %arg6: memref<27x27xf32, #tpu.memory_space<vmem>>, %arg7: memref<27x1xf32, #tpu.memory_space<vmem>>, %arg8: memref<27x27xf32, #tpu.memory_space<vmem>>, %arg9: memref<27x1xf32, #tpu.memory_space<vmem>>, %arg10: memref<27x4xf32, #tpu.memory_space<vmem>>, %arg11: memref<27x27xf32, #tpu.memory_space<vmem>>, %arg12: memref<27x1xf32, #tpu.memory_space<vmem>>, %arg13: memref<27x1xf32, #tpu.memory_space<vmem>>, %arg14: memref<1x1xf32, #tpu.memory_space<vmem>>, %arg15: memref<1x128xf32, #tpu.memory_space<vmem>>) attributes {dimension_semantics = [#tpu.dimension_semantics<parallel>], iteration_bounds = array<i64: 2>, scalar_prefetch = 0 : i64, scratch_operands = 0 : i64, tpu.core_type = #tpu.core_type<tc>, window_params = [{transform_indices = @transform_0, window_bounds = array<i64: 4, 128>}, {pipeline_mode = #tpu.pipeline_mode<synchronous>, transform_indices = @transform_1, window_bounds = array<i64: 27, 4>}, {pipeline_mode = #tpu.pipeline_mode<synchronous>, transform_indices = @transform_2, window_bounds = array<i64: 27, 1>}, {pipeline_mode = #tpu.pipeline_mode<synchronous>, transform_indices = @transform_3, window_bounds = array<i64: 27, 27>}, {pipeline_mode = #tpu.pipeline_mode<synchronous>, transform_indices = @transform_4, window_bounds = array<i64: 27, 1>}, {pipeline_mode = #tpu.pipeline_mode<synchronous>, transform_indices = @transform_5, window_bounds = array<i64: 27, 27>}, {pipeline_mode = #tpu.pipeline_mode<synchronous>, transform_indices = @transform_6, window_bounds = array<i64: 27, 1>}, {pipeline_mode = #tpu.pipeline_mode<synchronous>, transform_indices = @transform_7, window_bounds = array<i64: 27, 27>}, {pipeline_mode = #tpu.pipeline_mode<synchronous>, transform_indices = @transform_8, window_bounds = array<i64: 27, 1>}, {pipeline_mode = #tpu.pipeline_mode<synchronous>, transform_indices = @transform_9, window_bounds = array<i64: 27, 4>}, {pipeline_mode = #tpu.pipeline_mode<synchronous>, transform_indices = @transform_10, window_bounds = array<i64: 27, 27>}, {pipeline_mode = #tpu.pipeline_mode<synchronous>, transform_indices = @transform_11, window_bounds = array<i64: 27, 1>}, {pipeline_mode = #tpu.pipeline_mode<synchronous>, transform_indices = @transform_12, window_bounds = array<i64: 27, 1>}, {pipeline_mode = #tpu.pipeline_mode<synchronous>, transform_indices = @transform_13, window_bounds = array<i64: 1, 1>}, {transform_indices = @transform_14, window_bounds = array<i64: 1, 128>}]} {
    %c0 = arith.constant 0 : index
    %c0_0 = arith.constant 0 : index
    %0 = vector.load %arg1[%c0, %c0_0] : memref<4x128xf32, #tpu.memory_space<vmem>>, vector<4x128xf32>
    %c0_1 = arith.constant 0 : index
    %c0_2 = arith.constant 0 : index
    %1 = vector.load %arg2[%c0_1, %c0_2] : memref<27x4xf32, #tpu.memory_space<vmem>>, vector<27x4xf32>
    %cst = arith.constant dense<0.000000e+00> : vector<27x128xf32>
    %2 = tpu.matmul %1, %0, %cst {dimension_numbers = #tpu.dot_dimension_numbers<[1], [0], [0], [1], [0, 0, 1, 1], [], []>} : vector<27x4xf32>, vector<4x128xf32>, vector<27x128xf32> -> vector<27x128xf32>
    %c0_3 = arith.constant 0 : index
    %c0_4 = arith.constant 0 : index
    %3 = vector.load %arg3[%c0_3, %c0_4] : memref<27x1xf32, #tpu.memory_space<vmem>>, vector<27x1xf32>
    %4 = vector.broadcast %3 : vector<27x1xf32> to vector<27x128xf32>
    %5 = arith.addf %2, %4 : vector<27x128xf32>
    %cst_5 = arith.constant 0.000000e+00 : f32
    %6 = vector.broadcast %cst_5 : f32 to vector<27x128xf32>
    %7 = arith.maximumf %5, %6 : vector<27x128xf32>
    %c0_6 = arith.constant 0 : index
    %c0_7 = arith.constant 0 : index
    %8 = vector.load %arg4[%c0_6, %c0_7] : memref<27x27xf32, #tpu.memory_space<vmem>>, vector<27x27xf32>
    %cst_8 = arith.constant dense<0.000000e+00> : vector<27x128xf32>
    %9 = tpu.matmul %8, %7, %cst_8 {dimension_numbers = #tpu.dot_dimension_numbers<[1], [0], [0], [1], [0, 0, 1, 1], [], []>} : vector<27x27xf32>, vector<27x128xf32>, vector<27x128xf32> -> vector<27x128xf32>
    %c0_9 = arith.constant 0 : index
    %c0_10 = arith.constant 0 : index
    %10 = vector.load %arg5[%c0_9, %c0_10] : memref<27x1xf32, #tpu.memory_space<vmem>>, vector<27x1xf32>
    %11 = vector.broadcast %10 : vector<27x1xf32> to vector<27x128xf32>
    %12 = arith.addf %9, %11 : vector<27x128xf32>
    %cst_11 = arith.constant 0.000000e+00 : f32
    %13 = vector.broadcast %cst_11 : f32 to vector<27x128xf32>
    %14 = arith.maximumf %12, %13 : vector<27x128xf32>
    %c0_12 = arith.constant 0 : index
    %c0_13 = arith.constant 0 : index
    %15 = vector.load %arg6[%c0_12, %c0_13] : memref<27x27xf32, #tpu.memory_space<vmem>>, vector<27x27xf32>
    %cst_14 = arith.constant dense<0.000000e+00> : vector<27x128xf32>
    %16 = tpu.matmul %15, %14, %cst_14 {dimension_numbers = #tpu.dot_dimension_numbers<[1], [0], [0], [1], [0, 0, 1, 1], [], []>} : vector<27x27xf32>, vector<27x128xf32>, vector<27x128xf32> -> vector<27x128xf32>
    %c0_15 = arith.constant 0 : index
    %c0_16 = arith.constant 0 : index
    %17 = vector.load %arg7[%c0_15, %c0_16] : memref<27x1xf32, #tpu.memory_space<vmem>>, vector<27x1xf32>
    %18 = vector.broadcast %17 : vector<27x1xf32> to vector<27x128xf32>
    %19 = arith.addf %16, %18 : vector<27x128xf32>
    %cst_17 = arith.constant 0.000000e+00 : f32
    %20 = vector.broadcast %cst_17 : f32 to vector<27x128xf32>
    %21 = arith.maximumf %19, %20 : vector<27x128xf32>
    %c0_18 = arith.constant 0 : index
    %c0_19 = arith.constant 0 : index
    %22 = vector.load %arg8[%c0_18, %c0_19] : memref<27x27xf32, #tpu.memory_space<vmem>>, vector<27x27xf32>
    %cst_20 = arith.constant dense<0.000000e+00> : vector<27x128xf32>
    %23 = tpu.matmul %22, %21, %cst_20 {dimension_numbers = #tpu.dot_dimension_numbers<[1], [0], [0], [1], [0, 0, 1, 1], [], []>} : vector<27x27xf32>, vector<27x128xf32>, vector<27x128xf32> -> vector<27x128xf32>
    %c0_21 = arith.constant 0 : index
    %c0_22 = arith.constant 0 : index
    %24 = vector.load %arg9[%c0_21, %c0_22] : memref<27x1xf32, #tpu.memory_space<vmem>>, vector<27x1xf32>
    %25 = vector.broadcast %24 : vector<27x1xf32> to vector<27x128xf32>
    %26 = arith.addf %23, %25 : vector<27x128xf32>
    %cst_23 = arith.constant 0.000000e+00 : f32
    %27 = vector.broadcast %cst_23 : f32 to vector<27x128xf32>
    %28 = arith.maximumf %26, %27 : vector<27x128xf32>
    %c0_24 = arith.constant 0 : index
    %c0_25 = arith.constant 0 : index
    %29 = vector.load %arg10[%c0_24, %c0_25] : memref<27x4xf32, #tpu.memory_space<vmem>>, vector<27x4xf32>
    %cst_26 = arith.constant dense<0.000000e+00> : vector<27x128xf32>
    %30 = tpu.matmul %29, %0, %cst_26 {dimension_numbers = #tpu.dot_dimension_numbers<[1], [0], [0], [1], [0, 0, 1, 1], [], []>} : vector<27x4xf32>, vector<4x128xf32>, vector<27x128xf32> -> vector<27x128xf32>
    %c0_27 = arith.constant 0 : index
    %c0_28 = arith.constant 0 : index
    %31 = vector.load %arg11[%c0_27, %c0_28] : memref<27x27xf32, #tpu.memory_space<vmem>>, vector<27x27xf32>
    %cst_29 = arith.constant dense<0.000000e+00> : vector<27x128xf32>
    %32 = tpu.matmul %31, %28, %cst_29 {dimension_numbers = #tpu.dot_dimension_numbers<[1], [0], [0], [1], [0, 0, 1, 1], [], []>} : vector<27x27xf32>, vector<27x128xf32>, vector<27x128xf32> -> vector<27x128xf32>
    %33 = arith.addf %30, %32 : vector<27x128xf32>
    %c0_30 = arith.constant 0 : index
    %c0_31 = arith.constant 0 : index
    %34 = vector.load %arg12[%c0_30, %c0_31] : memref<27x1xf32, #tpu.memory_space<vmem>>, vector<27x1xf32>
    %35 = vector.broadcast %34 : vector<27x1xf32> to vector<27x128xf32>
    %36 = arith.addf %33, %35 : vector<27x128xf32>
    %cst_32 = arith.constant 0.000000e+00 : f32
    %37 = vector.broadcast %cst_32 : f32 to vector<27x128xf32>
    %38 = arith.maximumf %36, %37 : vector<27x128xf32>
    %c0_33 = arith.constant 0 : index
    %c0_34 = arith.constant 0 : index
    %39 = vector.load %arg13[%c0_33, %c0_34] : memref<27x1xf32, #tpu.memory_space<vmem>>, vector<27x1xf32>
    %40 = vector.broadcast %39 : vector<27x1xf32> to vector<27x128xf32>
    %41 = arith.mulf %38, %40 : vector<27x128xf32>
    %cst_35 = arith.constant dense<0.000000e+00> : vector<128xf32>
    %42 = vector.multi_reduction <add>, %41, %cst_35 [0] : vector<27x128xf32> to vector<128xf32>
    %43 = vector.shape_cast %42 : vector<128xf32> to vector<1x128xf32>
    %c0_36 = arith.constant 0 : index
    %c0_37 = arith.constant 0 : index
    %44 = vector.load %arg14[%c0_36, %c0_37] : memref<1x1xf32, #tpu.memory_space<vmem>>, vector<1x1xf32>
    %45 = vector.broadcast %44 : vector<1x1xf32> to vector<1x128xf32>
    %46 = arith.addf %43, %45 : vector<1x128xf32>
    %c0_38 = arith.constant 0 : index
    %c0_39 = arith.constant 0 : index
    %47 = vector.load %arg15[%c0_38, %c0_39] : memref<1x128xf32, #tpu.memory_space<vmem>>, vector<1x128xf32>
    tpu.vector_store %arg15[%c0_38, %c0_39], %46 {strides = array<i32>} : memref<1x128xf32, #tpu.memory_space<vmem>>, vector<1x128xf32>,
    return
  }
  func.func @transform_0(%arg0: i32) -> (i32, i32) {
    %c0_i32 = arith.constant 0 : i32
    %c0_i32_0 = arith.constant 0 : i32
    return %c0_i32, %arg0 : i32, i32
  }
  func.func @transform_1(%arg0: i32) -> (i32, i32) {
    %c0_i32 = arith.constant 0 : i32
    %c0_i32_0 = arith.constant 0 : i32
    %c0_i32_1 = arith.constant 0 : i32
    return %c0_i32, %c0_i32_0 : i32, i32
  }
  func.func @transform_2(%arg0: i32) -> (i32, i32) {
    %c0_i32 = arith.constant 0 : i32
    %c0_i32_0 = arith.constant 0 : i32
    %c0_i32_1 = arith.constant 0 : i32
    return %c0_i32, %c0_i32_0 : i32, i32
  }
  func.func @transform_3(%arg0: i32) -> (i32, i32) {
    %c0_i32 = arith.constant 0 : i32
    %c0_i32_0 = arith.constant 0 : i32
    %c0_i32_1 = arith.constant 0 : i32
    return %c0_i32, %c0_i32_0 : i32, i32
  }
  func.func @transform_4(%arg0: i32) -> (i32, i32) {
    %c0_i32 = arith.constant 0 : i32
    %c0_i32_0 = arith.constant 0 : i32
    %c0_i32_1 = arith.constant 0 : i32
    return %c0_i32, %c0_i32_0 : i32, i32
  }
  func.func @transform_5(%arg0: i32) -> (i32, i32) {
    %c0_i32 = arith.constant 0 : i32
    %c0_i32_0 = arith.constant 0 : i32
    %c0_i32_1 = arith.constant 0 : i32
    return %c0_i32, %c0_i32_0 : i32, i32
  }
  func.func @transform_6(%arg0: i32) -> (i32, i32) {
    %c0_i32 = arith.constant 0 : i32
    %c0_i32_0 = arith.constant 0 : i32
    %c0_i32_1 = arith.constant 0 : i32
    return %c0_i32, %c0_i32_0 : i32, i32
  }
  func.func @transform_7(%arg0: i32) -> (i32, i32) {
    %c0_i32 = arith.constant 0 : i32
    %c0_i32_0 = arith.constant 0 : i32
    %c0_i32_1 = arith.constant 0 : i32
    return %c0_i32, %c0_i32_0 : i32, i32
  }
  func.func @transform_8(%arg0: i32) -> (i32, i32) {
    %c0_i32 = arith.constant 0 : i32
    %c0_i32_0 = arith.constant 0 : i32
    %c0_i32_1 = arith.constant 0 : i32
    return %c0_i32, %c0_i32_0 : i32, i32
  }
  func.func @transform_9(%arg0: i32) -> (i32, i32) {
    %c0_i32 = arith.constant 0 : i32
    %c0_i32_0 = arith.constant 0 : i32
    %c0_i32_1 = arith.constant 0 : i32
    return %c0_i32, %c0_i32_0 : i32, i32
  }
  func.func @transform_10(%arg0: i32) -> (i32, i32) {
    %c0_i32 = arith.constant 0 : i32
    %c0_i32_0 = arith.constant 0 : i32
    %c0_i32_1 = arith.constant 0 : i32
    return %c0_i32, %c0_i32_0 : i32, i32
  }
  func.func @transform_11(%arg0: i32) -> (i32, i32) {
    %c0_i32 = arith.constant 0 : i32
    %c0_i32_0 = arith.constant 0 : i32
    %c0_i32_1 = arith.constant 0 : i32
    return %c0_i32, %c0_i32_0 : i32, i32
  }
  func.func @transform_12(%arg0: i32) -> (i32, i32) {
    %c0_i32 = arith.constant 0 : i32
    %c0_i32_0 = arith.constant 0 : i32
    %c0_i32_1 = arith.constant 0 : i32
    return %c0_i32, %c0_i32_0 : i32, i32
  }
  func.func @transform_13(%arg0: i32) -> (i32, i32) {
    %c0_i32 = arith.constant 0 : i32
    %c0_i32_0 = arith.constant 0 : i32
    %c0_i32_1 = arith.constant 0 : i32
    return %c0_i32, %c0_i32_0 : i32, i32
  }
  func.func @transform_14(%arg0: i32) -> (i32, i32) {
    %c0_i32 = arith.constant 0 : i32
    %c0_i32_0 = arith.constant 0 : i32
    return %c0_i32, %arg0 : i32, i32
  }
}

</mosaic_0001>

<llo_original>
// kernel: nn_forward.1
$region0: #{nn_forward.1}
  #allocation0 [shape = 'u32[]', space=smem, size = 0x4, offset = 0x4, fixed_abs, tag = 'smem constant byte address 0x4 - core index']
  #allocation1 [shape = 'u32[144,128]{1,0:T(1,128)}', space=vmem, size = 0x12000, scoped, tag = 'internal scratch']
  #allocation2 [shape = 'f32[1,1]{1,0:T(1,128)S(1)}', space=vmem, size = 0x200, scoped, tag = 'scoped memory for nn_forward.1']
  %s0 = inlined_call_operand.vmem [shape: f32[4,256], index: 0, kind: input, shape index: {}]
  %s1 = inlined_call_operand.vmem [shape: f32[27,4], index: 1, kind: input, shape index: {}]
  %s2 = inlined_call_operand.vmem [shape: f32[27,1], index: 2, kind: input, shape index: {}]
  %s3 = inlined_call_operand.vmem [shape: f32[27,27], index: 3, kind: input, shape index: {}]
  %s4 = inlined_call_operand.vmem [shape: f32[27,1], index: 4, kind: input, shape index: {}]
  %s5 = inlined_call_operand.vmem [shape: f32[27,27], index: 5, kind: input, shape index: {}]
  %s6 = inlined_call_operand.vmem [shape: f32[27,1], index: 6, kind: input, shape index: {}]
  %s7 = inlined_call_operand.vmem [shape: f32[27,27], index: 7, kind: input, shape index: {}]
  %s8 = inlined_call_operand.vmem [shape: f32[27,1], index: 8, kind: input, shape index: {}]
  %s9 = inlined_call_operand.vmem [shape: f32[27,4], index: 9, kind: input, shape index: {}]
  %s10 = inlined_call_operand.vmem [shape: f32[27,27], index: 10, kind: input, shape index: {}]
  %s11 = inlined_call_operand.vmem [shape: f32[27,1], index: 11, kind: input, shape index: {}]
  %s12 = inlined_call_operand.vmem [shape: f32[27,1], index: 12, kind: input, shape index: {}]
  %s13 = inlined_call_operand.<no memory space> [shape: f32[1,1], index: 13, kind: input, shape index: {}]
  %s14 = inlined_call_operand.hbm [shape: f32[1,256], index: 14, kind: output, shape index: {}]
  %s15 = sld [smem:[#allocation0]]
  $region89: #{nn_forward.1} parent=0
    _
  %s17 = ssub.s32 1, %s15
  %s18 = scalar_select 0, %s17, %s15
  %v19 = vstv %s13
  %20 = vst [vmem:[#allocation2] sm:$0x1] %v19
  $region1: #{nn_forward.1} parent=0
    #allocation3 [shape = 'u8[1024]{0}', space=vmem, size = 0x400, scoped, tag = 'output window, operand 0']
    #allocation4 [shape = 's32[2]{0}', space=sflag, size = 0x8, scoped, tag = 'scoped memory for nn_forward.1']
    %21 = vsyncpa [#allocation4], 0
    %s22 = scalar_lea.sflag [#allocation4], 1
    %23 = vsyncpa %s22, 0
    loop: start=0, step=1, limit=4
    $region2: #{nn_forward.1} parent=1 // loop_pre_header
      _
    $region3: #{nn_forward.1} parent=1 // loop_header
      %s25 = sphi 0, %s29
      %p26 = scmp.ge.s32.totalorder %s25, 4
      %s35 = sphi 0, %s37
      %s38 = sphi 0, %s35
      %s39 = sphi 0, %s38
      %s55 = sphi 0, %s39
      %s59 = sphi 0, %s59
      %s61 = sphi 0, %s59
      %s62 = sphi 0, %s61
      %s76 = sphi 0, %s62
      %s80 = sphi 0, %s80
      %s82 = sphi 0, %s80
      %s83 = sphi 0, %s82
      %s97 = sphi 0, %s83
      %s101 = sphi 0, %s101
      %s103 = sphi 0, %s101
      %s104 = sphi 0, %s103
      %s118 = sphi 0, %s104
      %s122 = sphi 0, %s122
      %s124 = sphi 0, %s122
      %s125 = sphi 0, %s124
      %s139 = sphi 0, %s125
      %s143 = sphi 0, %s143
      %s145 = sphi 0, %s143
      %s146 = sphi 0, %s145
      %s160 = sphi 0, %s146
      %s164 = sphi 0, %s164
      %s166 = sphi 0, %s164
      %s167 = sphi 0, %s166
      %s181 = sphi 0, %s167
      %s185 = sphi 0, %s185
      %s187 = sphi 0, %s185
      %s188 = sphi 0, %s187
      %s202 = sphi 0, %s188
      %s206 = sphi 0, %s206
      %s208 = sphi 0, %s206
      %s209 = sphi 0, %s208
      %s223 = sphi 0, %s209
      %s227 = sphi 0, %s227
      %s229 = sphi 0, %s227
      %s230 = sphi 0, %s229
      %s244 = sphi 0, %s230
      %s248 = sphi 0, %s248
      %s250 = sphi 0, %s248
      %s251 = sphi 0, %s250
      %s265 = sphi 0, %s251
      %s269 = sphi 0, %s269
      %s271 = sphi 0, %s269
      %s272 = sphi 0, %s271
      %s286 = sphi 0, %s272
      %s290 = sphi 0, %s290
      %s292 = sphi 0, %s290
      %s293 = sphi 0, %s292
      %s307 = sphi 0, %s293
      %s311 = sphi 0, %s311
      %s313 = sphi 0, %s311
      %s314 = sphi 0, %s313
      %s328 = sphi 0, %s314
      %s334 = sphi 0, %s336
      %s337 = sphi 0, %s334
      %s338 = sphi 0, %s337
      %s354 = sphi 0, %s338
    $region4: #{nn_forward.1} parent=1 // loop_header_branch
      %28 = sbr.rel (%p26) target = $region8
    $region5: #{nn_forward.1} parent=1 // loop_body
      %s30 = ssub.s32 %s25, 1
      %s31 = ssub.s32 %s25, 2
      %s32 = sadd.s32 %s25, 1
      %s33 = ssub.s32 %s25, %s32
      %p34 = scmp.eq.s32.totalorder %s33, 0
      %s36 = sadd.s32 %s35, 1
      %s37 = scalar_select %p34, %s35, %s36
      %p40 = pneg %p34
      %p41 = scmp.eq.s32.totalorder %s25, 1
      %p42 = por %p40, %p41
      %p43 = scmp.ne.s32.totalorder %s35, %s38
      %p44 = scmp.eq.s32.totalorder %s25, 0
      %p45 = por %p43, %p44
      %p46 = scmp.ne.s32.totalorder %s35, %s38
      %p47 = scmp.eq.s32.totalorder %s30, 1
      %p48 = por %p46, %p47
      %p49 = scmp.ne.s32.totalorder %s38, %s39
      %p50 = scmp.eq.s32.totalorder %s30, 0
      %p51 = por %p49, %p50
      %p52 = scmp.ne.s32.totalorder %s38, %s39
      %p53 = scmp.eq.s32.totalorder %s31, 1
      %p54 = por %p52, %p53
      %p56 = scmp.ne.s32.totalorder %s39, %s55
      %p57 = scmp.eq.s32.totalorder %s31, 0
      %p58 = por %p56, %p57
      %s60 = sadd.s32 %s59, 1
      %p63 = scmp.eq.s32.totalorder %s25, 1
      %p64 = scmp.ne.s32.totalorder %s59, %s61
      %p65 = scmp.eq.s32.totalorder %s25, 0
      %p66 = por %p64, %p65
      %p67 = scmp.ne.s32.totalorder %s59, %s61
      %p68 = scmp.eq.s32.totalorder %s30, 1
      %p69 = por %p67, %p68
      %p70 = scmp.ne.s32.totalorder %s61, %s62
      %p71 = scmp.eq.s32.totalorder %s30, 0
      %p72 = por %p70, %p71
      %p73 = scmp.ne.s32.totalorder %s61, %s62
      %p74 = scmp.eq.s32.totalorder %s31, 1
      %p75 = por %p73, %p74
      %p77 = scmp.ne.s32.totalorder %s62, %s76
      %p78 = scmp.eq.s32.totalorder %s31, 0
      %p79 = por %p77, %p78
      %s81 = sadd.s32 %s80, 1
      %p84 = scmp.eq.s32.totalorder %s25, 1
      %p85 = scmp.ne.s32.totalorder %s80, %s82
      %p86 = scmp.eq.s32.totalorder %s25, 0
      %p87 = por %p85, %p86
      %p88 = scmp.ne.s32.totalorder %s80, %s82
      %p89 = scmp.eq.s32.totalorder %s30, 1
      %p90 = por %p88, %p89
      %p91 = scmp.ne.s32.totalorder %s82, %s83
      %p92 = scmp.eq.s32.totalorder %s30, 0
      %p93 = por %p91, %p92
      %p94 = scmp.ne.s32.totalorder %s82, %s83
      %p95 = scmp.eq.s32.totalorder %s31, 1
      %p96 = por %p94, %p95
      %p98 = scmp.ne.s32.totalorder %s83, %s97
      %p99 = scmp.eq.s32.totalorder %s31, 0
      %p100 = por %p98, %p99
      %s102 = sadd.s32 %s101, 1
      %p105 = scmp.eq.s32.totalorder %s25, 1
      %p106 = scmp.ne.s32.totalorder %s101, %s103
      %p107 = scmp.eq.s32.totalorder %s25, 0
      %p108 = por %p106, %p107
      %p109 = scmp.ne.s32.totalorder %s101, %s103
      %p110 = scmp.eq.s32.totalorder %s30, 1
      %p111 = por %p109, %p110
      %p112 = scmp.ne.s32.totalorder %s103, %s104
      %p113 = scmp.eq.s32.totalorder %s30, 0
      %p114 = por %p112, %p113
      %p115 = scmp.ne.s32.totalorder %s103, %s104
      %p116 = scmp.eq.s32.totalorder %s31, 1
      %p117 = por %p115, %p116
      %p119 = scmp.ne.s32.totalorder %s104, %s118
      %p120 = scmp.eq.s32.totalorder %s31, 0
      %p121 = por %p119, %p120
      %s123 = sadd.s32 %s122, 1
      %p126 = scmp.eq.s32.totalorder %s25, 1
      %p127 = scmp.ne.s32.totalorder %s122, %s124
      %p128 = scmp.eq.s32.totalorder %s25, 0
      %p129 = por %p127, %p128
      %p130 = scmp.ne.s32.totalorder %s122, %s124
      %p131 = scmp.eq.s32.totalorder %s30, 1
      %p132 = por %p130, %p131
      %p133 = scmp.ne.s32.totalorder %s124, %s125
      %p134 = scmp.eq.s32.totalorder %s30, 0
      %p135 = por %p133, %p134
      %p136 = scmp.ne.s32.totalorder %s124, %s125
      %p137 = scmp.eq.s32.totalorder %s31, 1
      %p138 = por %p136, %p137
      %p140 = scmp.ne.s32.totalorder %s125, %s139
      %p141 = scmp.eq.s32.totalorder %s31, 0
      %p142 = por %p140, %p141
      %s144 = sadd.s32 %s143, 1
      %p147 = scmp.eq.s32.totalorder %s25, 1
      %p148 = scmp.ne.s32.totalorder %s143, %s145
      %p149 = scmp.eq.s32.totalorder %s25, 0
      %p150 = por %p148, %p149
      %p151 = scmp.ne.s32.totalorder %s143, %s145
      %p152 = scmp.eq.s32.totalorder %s30, 1
      %p153 = por %p151, %p152
      %p154 = scmp.ne.s32.totalorder %s145, %s146
      %p155 = scmp.eq.s32.totalorder %s30, 0
      %p156 = por %p154, %p155
      %p157 = scmp.ne.s32.totalorder %s145, %s146
      %p158 = scmp.eq.s32.totalorder %s31, 1
      %p159 = por %p157, %p158
      %p161 = scmp.ne.s32.totalorder %s146, %s160
      %p162 = scmp.eq.s32.totalorder %s31, 0
      %p163 = por %p161, %p162
      %s165 = sadd.s32 %s164, 1
      %p168 = scmp.eq.s32.totalorder %s25, 1
      %p169 = scmp.ne.s32.totalorder %s164, %s166
      %p170 = scmp.eq.s32.totalorder %s25, 0
      %p171 = por %p169, %p170
      %p172 = scmp.ne.s32.totalorder %s164, %s166
      %p173 = scmp.eq.s32.totalorder %s30, 1
      %p174 = por %p172, %p173
      %p175 = scmp.ne.s32.totalorder %s166, %s167
      %p176 = scmp.eq.s32.totalorder %s30, 0
      %p177 = por %p175, %p176
      %p178 = scmp.ne.s32.totalorder %s166, %s167
      %p179 = scmp.eq.s32.totalorder %s31, 1
      %p180 = por %p178, %p179
      %p182 = scmp.ne.s32.totalorder %s167, %s181
      %p183 = scmp.eq.s32.totalorder %s31, 0
      %p184 = por %p182, %p183
      %s186 = sadd.s32 %s185, 1
      %p189 = scmp.eq.s32.totalorder %s25, 1
      %p190 = scmp.ne.s32.totalorder %s185, %s187
      %p191 = scmp.eq.s32.totalorder %s25, 0
      %p192 = por %p190, %p191
      %p193 = scmp.ne.s32.totalorder %s185, %s187
      %p194 = scmp.eq.s32.totalorder %s30, 1
      %p195 = por %p193, %p194
      %p196 = scmp.ne.s32.totalorder %s187, %s188
      %p197 = scmp.eq.s32.totalorder %s30, 0
      %p198 = por %p196, %p197
      %p199 = scmp.ne.s32.totalorder %s187, %s188
      %p200 = scmp.eq.s32.totalorder %s31, 1
      %p201 = por %p199, %p200
      %p203 = scmp.ne.s32.totalorder %s188, %s202
      %p204 = scmp.eq.s32.totalorder %s31, 0
      %p205 = por %p203, %p204
      %s207 = sadd.s32 %s206, 1
      %p210 = scmp.eq.s32.totalorder %s25, 1
      %p211 = scmp.ne.s32.totalorder %s206, %s208
      %p212 = scmp.eq.s32.totalorder %s25, 0
      %p213 = por %p211, %p212
      %p214 = scmp.ne.s32.totalorder %s206, %s208
      %p215 = scmp.eq.s32.totalorder %s30, 1
      %p216 = por %p214, %p215
      %p217 = scmp.ne.s32.totalorder %s208, %s209
      %p218 = scmp.eq.s32.totalorder %s30, 0
      %p219 = por %p217, %p218
      %p220 = scmp.ne.s32.totalorder %s208, %s209
      %p221 = scmp.eq.s32.totalorder %s31, 1
      %p222 = por %p220, %p221
      %p224 = scmp.ne.s32.totalorder %s209, %s223
      %p225 = scmp.eq.s32.totalorder %s31, 0
      %p226 = por %p224, %p225
      %s228 = sadd.s32 %s227, 1
      %p231 = scmp.eq.s32.totalorder %s25, 1
      %p232 = scmp.ne.s32.totalorder %s227, %s229
      %p233 = scmp.eq.s32.totalorder %s25, 0
      %p234 = por %p232, %p233
      %p235 = scmp.ne.s32.totalorder %s227, %s229
      %p236 = scmp.eq.s32.totalorder %s30, 1
      %p237 = por %p235, %p236
      %p238 = scmp.ne.s32.totalorder %s229, %s230
      %p239 = scmp.eq.s32.totalorder %s30, 0
      %p240 = por %p238, %p239
      %p241 = scmp.ne.s32.totalorder %s229, %s230
      %p242 = scmp.eq.s32.totalorder %s31, 1
      %p243 = por %p241, %p242
      %p245 = scmp.ne.s32.totalorder %s230, %s244
      %p246 = scmp.eq.s32.totalorder %s31, 0
      %p247 = por %p245, %p246
      %s249 = sadd.s32 %s248, 1
      %p252 = scmp.eq.s32.totalorder %s25, 1
      %p253 = scmp.ne.s32.totalorder %s248, %s250
      %p254 = scmp.eq.s32.totalorder %s25, 0
      %p255 = por %p253, %p254
      %p256 = scmp.ne.s32.totalorder %s248, %s250
      %p257 = scmp.eq.s32.totalorder %s30, 1
      %p258 = por %p256, %p257
      %p259 = scmp.ne.s32.totalorder %s250, %s251
      %p260 = scmp.eq.s32.totalorder %s30, 0
      %p261 = por %p259, %p260
      %p262 = scmp.ne.s32.totalorder %s250, %s251
      %p263 = scmp.eq.s32.totalorder %s31, 1
      %p264 = por %p262, %p263
      %p266 = scmp.ne.s32.totalorder %s251, %s265
      %p267 = scmp.eq.s32.totalorder %s31, 0
      %p268 = por %p266, %p267
      %s270 = sadd.s32 %s269, 1
      %p273 = scmp.eq.s32.totalorder %s25, 1
      %p274 = scmp.ne.s32.totalorder %s269, %s271
      %p275 = scmp.eq.s32.totalorder %s25, 0
      %p276 = por %p274, %p275
      %p277 = scmp.ne.s32.totalorder %s269, %s271
      %p278 = scmp.eq.s32.totalorder %s30, 1
      %p279 = por %p277, %p278
      %p280 = scmp.ne.s32.totalorder %s271, %s272
      %p281 = scmp.eq.s32.totalorder %s30, 0
      %p282 = por %p280, %p281
      %p283 = scmp.ne.s32.totalorder %s271, %s272
      %p284 = scmp.eq.s32.totalorder %s31, 1
      %p285 = por %p283, %p284
      %p287 = scmp.ne.s32.totalorder %s272, %s286
      %p288 = scmp.eq.s32.totalorder %s31, 0
      %p289 = por %p287, %p288
      %s291 = sadd.s32 %s290, 1
      %p294 = scmp.eq.s32.totalorder %s25, 1
      %p295 = scmp.ne.s32.totalorder %s290, %s292
      %p296 = scmp.eq.s32.totalorder %s25, 0
      %p297 = por %p295, %p296
      %p298 = scmp.ne.s32.totalorder %s290, %s292
      %p299 = scmp.eq.s32.totalorder %s30, 1
      %p300 = por %p298, %p299
      %p301 = scmp.ne.s32.totalorder %s292, %s293
      %p302 = scmp.eq.s32.totalorder %s30, 0
      %p303 = por %p301, %p302
      %p304 = scmp.ne.s32.totalorder %s292, %s293
      %p305 = scmp.eq.s32.totalorder %s31, 1
      %p306 = por %p304, %p305
      %p308 = scmp.ne.s32.totalorder %s293, %s307
      %p309 = scmp.eq.s32.totalorder %s31, 0
      %p310 = por %p308, %p309
      %s312 = sadd.s32 %s311, 1
      %p315 = scmp.eq.s32.totalorder %s25, 1
      %p316 = scmp.ne.s32.totalorder %s311, %s313
      %p317 = scmp.eq.s32.totalorder %s25, 0
      %p318 = por %p316, %p317
      %p319 = scmp.ne.s32.totalorder %s311, %s313
      %p320 = scmp.eq.s32.totalorder %s30, 1
      %p321 = por %p319, %p320
      %p322 = scmp.ne.s32.totalorder %s313, %s314
      %p323 = scmp.eq.s32.totalorder %s30, 0
      %p324 = por %p322, %p323
      %p325 = scmp.ne.s32.totalorder %s313, %s314
      %p326 = scmp.eq.s32.totalorder %s31, 1
      %p327 = por %p325, %p326
      %p329 = scmp.ne.s32.totalorder %s314, %s328
      %p330 = scmp.eq.s32.totalorder %s31, 0
      %p331 = por %p329, %p330
      %s332 = ssub.s32 %s25, %s32
      %p333 = scmp.eq.s32.totalorder %s332, 0
      %s335 = sadd.s32 %s334, 1
      %s336 = scalar_select %p333, %s334, %s335
      %p339 = pneg %p333
      %p340 = scmp.eq.s32.totalorder %s25, 1
      %p341 = por %p339, %p340
      %p342 = scmp.ne.s32.totalorder %s334, %s337
      %p343 = scmp.eq.s32.totalorder %s25, 0
      %p344 = por %p342, %p343
      %p345 = scmp.ne.s32.totalorder %s334, %s337
      %p346 = scmp.eq.s32.totalorder %s30, 1
      %p347 = por %p345, %p346
      %p348 = scmp.ne.s32.totalorder %s337, %s338
      %p349 = scmp.eq.s32.totalorder %s30, 0
      %p350 = por %p348, %p349
      %p351 = scmp.ne.s32.totalorder %s337, %s338
      %p352 = scmp.eq.s32.totalorder %s31, 1
      %p353 = por %p351, %p352
      %p355 = scmp.ne.s32.totalorder %s338, %s354
      %p356 = scmp.eq.s32.totalorder %s31, 0
      %p357 = por %p355, %p356
      %p358 = scmp.le.s32.totalorder 1, %s25
      %p359 = scmp.lt.s32.totalorder %s25, 3
      %p360 = pnand %p358, %p359
      %p361 = pneg %p360
      // Predicated region
      $region9: #{nn_forward.1} parent=5 // pred_check
        _
      $region10: #{nn_forward.1} parent=5 // pred_check_branch
        %363 = sbr.rel (%p360) target = $region12
      $region11: #{nn_forward.1} parent=5 // pred_region
        %s364 = ssub.s32 %s25, 1
        // Predicated region
        $region13: #{nn_forward.1} parent=11 // pred_check
          %p365 = pneg %p72
        $region14: #{nn_forward.1} parent=11 // pred_check_branch
          %367 = sbr.rel (%p365) target = $region16
        $region15: #{nn_forward.1} parent=11 // pred_region
          _
        $region16: #{nn_forward.1} parent=11 // pred_fallthru
          _
        // Predicated region
        $region17: #{nn_forward.1} parent=11 // pred_check
          %p368 = pneg %p93
        $region18: #{nn_forward.1} parent=11 // pred_check_branch
          %370 = sbr.rel (%p368) target = $region20
        $region19: #{nn_forward.1} parent=11 // pred_region
          _
        $region20: #{nn_forward.1} parent=11 // pred_fallthru
          _
        // Predicated region
        $region21: #{nn_forward.1} parent=11 // pred_check
          %p371 = pneg %p114
        $region22: #{nn_forward.1} parent=11 // pred_check_branch
          %373 = sbr.rel (%p371) target = $region24
        $region23: #{nn_forward.1} parent=11 // pred_region
          _
        $region24: #{nn_forward.1} parent=11 // pred_fallthru
          _
        // Predicated region
        $region25: #{nn_forward.1} parent=11 // pred_check
          %p374 = pneg %p135
        $region26: #{nn_forward.1} parent=11 // pred_check_branch
          %376 = sbr.rel (%p374) target = $region28
        $region27: #{nn_forward.1} parent=11 // pred_region
          _
        $region28: #{nn_forward.1} parent=11 // pred_fallthru
          _
        // Predicated region
        $region29: #{nn_forward.1} parent=11 // pred_check
          %p377 = pneg %p156
        $region30: #{nn_forward.1} parent=11 // pred_check_branch
          %379 = sbr.rel (%p377) target = $region32
        $region31: #{nn_forward.1} parent=11 // pred_region
          _
        $region32: #{nn_forward.1} parent=11 // pred_fallthru
          _
        // Predicated region
        $region33: #{nn_forward.1} parent=11 // pred_check
          %p380 = pneg %p177
        $region34: #{nn_forward.1} parent=11 // pred_check_branch
          %382 = sbr.rel (%p380) target = $region36
        $region35: #{nn_forward.1} parent=11 // pred_region
          _
        $region36: #{nn_forward.1} parent=11 // pred_fallthru
          _
        // Predicated region
        $region37: #{nn_forward.1} parent=11 // pred_check
          %p383 = pneg %p198
        $region38: #{nn_forward.1} parent=11 // pred_check_branch
          %385 = sbr.rel (%p383) target = $region40
        $region39: #{nn_forward.1} parent=11 // pred_region
          _
        $region40: #{nn_forward.1} parent=11 // pred_fallthru
          _
        // Predicated region
        $region41: #{nn_forward.1} parent=11 // pred_check
          %p386 = pneg %p219
        $region42: #{nn_forward.1} parent=11 // pred_check_branch
          %388 = sbr.rel (%p386) target = $region44
        $region43: #{nn_forward.1} parent=11 // pred_region
          _
        $region44: #{nn_forward.1} parent=11 // pred_fallthru
          _
        // Predicated region
        $region45: #{nn_forward.1} parent=11 // pred_check
          %p389 = pneg %p240
        $region46: #{nn_forward.1} parent=11 // pred_check_branch
          %391 = sbr.rel (%p389) target = $region48
        $region47: #{nn_forward.1} parent=11 // pred_region
          _
        $region48: #{nn_forward.1} parent=11 // pred_fallthru
          _
        // Predicated region
        $region49: #{nn_forward.1} parent=11 // pred_check
          %p392 = pneg %p261
        $region50: #{nn_forward.1} parent=11 // pred_check_branch
          %394 = sbr.rel (%p392) target = $region52
        $region51: #{nn_forward.1} parent=11 // pred_region
          _
        $region52: #{nn_forward.1} parent=11 // pred_fallthru
          _
        // Predicated region
        $region53: #{nn_forward.1} parent=11 // pred_check
          %p395 = pneg %p282
        $region54: #{nn_forward.1} parent=11 // pred_check_branch
          %397 = sbr.rel (%p395) target = $region56
        $region55: #{nn_forward.1} parent=11 // pred_region
          _
        $region56: #{nn_forward.1} parent=11 // pred_fallthru
          _
        // Predicated region
        $region57: #{nn_forward.1} parent=11 // pred_check
          %p398 = pneg %p303
        $region58: #{nn_forward.1} parent=11 // pred_check_branch
          %400 = sbr.rel (%p398) target = $region60
        $region59: #{nn_forward.1} parent=11 // pred_region
          _
        $region60: #{nn_forward.1} parent=11 // pred_fallthru
          _
        // Predicated region
        $region61: #{nn_forward.1} parent=11 // pred_check
          %p401 = pneg %p324
        $region62: #{nn_forward.1} parent=11 // pred_check_branch
          %403 = sbr.rel (%p401) target = $region64
        $region63: #{nn_forward.1} parent=11 // pred_region
          _
        $region64: #{nn_forward.1} parent=11 // pred_fallthru
          _
      $region12: #{nn_forward.1} parent=5 // pred_fallthru
        _
      %p404 = scmp.lt.s32.totalorder %s25, 2
      // Predicated region
      $region65: #{nn_forward.1} parent=5 // pred_check
        %p405 = pneg %p404
      $region66: #{nn_forward.1} parent=5 // pred_check_branch
        %407 = sbr.rel (%p405) target = $region68
      $region67: #{nn_forward.1} parent=5 // pred_region
        // Predicated region
        $region69: #{nn_forward.1} parent=67 // pred_check
          %p408 = pneg %p45
        $region70: #{nn_forward.1} parent=67 // pred_check_branch
          %410 = sbr.rel (%p408) target = $region72
        $region71: #{nn_forward.1} parent=67 // pred_region
          %p411 = scmp.lt.s32.totalorder %s25, 1
          %s412 = scalar_select %p411, %s25, 1
          %s413 = smul.addr %s412, 4
          %s414 = scalar_lea.vmem %s0, %s413
        $region72: #{nn_forward.1} parent=67 // pred_fallthru
          _
      $region68: #{nn_forward.1} parent=5 // pred_fallthru
        _
      %p415 = scmp.le.s32.totalorder 1, %s25
      %p416 = scmp.lt.s32.totalorder %s25, 3
      %p417 = pnand %p415, %p416
      %p418 = pneg %p417
      // Predicated region
      $region73: #{nn_forward.1} parent=5 // pred_check
        _
      $region74: #{nn_forward.1} parent=5 // pred_check_branch
        %420 = sbr.rel (%p417) target = $region76
      $region75: #{nn_forward.1} parent=5 // pred_region
        %s421 = ssub.s32 %s25, 1
        %p422 = scmp.lt.s32.totalorder %s30, 1
        %s423 = scalar_select %p422, %s30, 1
        %s424 = smul.addr %s423, 4
        %s425 = scalar_lea.vmem %s0, %s424
        %p426 = pneg %p51
        %p427 = pneg %p48
        %p428 = pneg %p72
        %p429 = pneg %p69
        %p430 = pneg %p93
        %p431 = pneg %p90
        %p432 = pneg %p114
        %p433 = pneg %p111
        %p434 = pneg %p135
        %p435 = pneg %p132
        %p436 = pneg %p156
        %p437 = pneg %p153
        %p438 = pneg %p177
        %p439 = pneg %p174
        %p440 = pneg %p198
        %p441 = pneg %p195
        %p442 = pneg %p219
        %p443 = pneg %p216
        %p444 = pneg %p240
        %p445 = pneg %p237
        %p446 = pneg %p261
        %p447 = pneg %p258
        %p448 = pneg %p282
        %p449 = pneg %p279
        %p450 = pneg %p303
        %p451 = pneg %p300
        %p452 = pneg %p324
        %p453 = pneg %p321
        %p454 = pneg %p350
        %p455 = pneg %p347
        %s456 = sand.u32 %s337, 1
        %s457 = scalar_lea.sflag [#allocation4], %s456
        %s458 = sand.u32 %s337, 1
        %s459 = scalar_lea.vmem [#allocation3], %s458
        %p460 = scmp.lt.s32.totalorder %s30, 1
        %s461 = scalar_select %p460, %s30, 1
        %s462 = smul.addr %s461, 4
        %s463 = scalar_lea.vmem %s0, %s462
        %v464 = vld [vmem:[%s463] sm:$0xf]
        %v465 = vld [vmem:[%s1] sm:$0xff]
        %v466 = vld [vmem:[%s1 + $0x8] sm:$0xff]
        %v467 = vld [vmem:[%s1 + $0x10] sm:$0xff]
        %v468 = vld [vmem:[%s1 + $0x18] sm:$0x7]
        %v469 = vld [vmem:[%s2] sm:$0xff]
        %v470 = vld [vmem:[%s2 + $0x8] sm:$0xff]
        %v471 = vld [vmem:[%s2 + $0x10] sm:$0xff]
        %v472 = vld [vmem:[%s2 + $0x18] sm:$0x7]
        %474 = vset.pattern.permute.xlu0 0
        %475 = vperm.xlu0 %474, %v469
        %v476 = vpop.permute.xlu0 %475
        %479 = vset.pattern.permute.xlu0 0
        %480 = vperm.xlu0 %479, %v470
        %v481 = vpop.permute.xlu0 %480
        %484 = vset.pattern.permute.xlu0 0
        %485 = vperm.xlu0 %484, %v471
        %v486 = vpop.permute.xlu0 %485
        %489 = vset.pattern.permute.xlu0 0
        %490 = vperm.xlu0 %489, %v472
        %v491 = vpop.permute.xlu0 %490
        %vm493 = vcmask 31744
        %v495 = vsel %vm493, %v465, 0
        %v498 = vsel %vm493, %v466, 0
        %v501 = vsel %vm493, %v467, 0
        %v504 = vsel %vm493, %v468, 0
        %vm506 = vcmask 1043456
        %v508 = vsel %vm506, %v464, 0
        %510 = vmatprep.subr.mxu0 0.0
        %511 = vmatpush1.msra.mxu0 %v508
        %512 = vmatprep.subr.mxu0 0.0
        %513 = vmatpush1.msra.mxu0 0.0
        %514 = vmatprep.subr.mxu0 0.0
        %515 = vmatpush1.msra.mxu0 0.0
        %516 = vmatprep.subr.mxu0 0.0
        %517 = vmatpush1.msra.mxu0 0.0
        %518 = vmatprep.subr.mxu0 0.0
        %519 = vmatpush1.msra.mxu0 0.0
        %520 = vmatprep.subr.mxu0 0.0
        %521 = vmatpush1.msra.mxu0 0.0
        %522 = vmatprep.subr.mxu0 0.0
        %523 = vmatpush1.msra.mxu0 0.0
        %524 = vmatprep.subr.mxu0 0.0
        %525 = vmatpush1.msra.mxu0 0.0
        %526 = vmatprep.subr.mxu0 0.0
        %527 = vmatpush1.msra.mxu0 0.0
        %528 = vmatprep.subr.mxu0 0.0
        %529 = vmatpush1.msra.mxu0 0.0
        %530 = vmatprep.subr.mxu0 0.0
        %531 = vmatpush1.msra.mxu0 0.0
        %532 = vmatprep.subr.mxu0 0.0
        %533 = vmatpush1.msra.mxu0 0.0
        %534 = vmatprep.subr.mxu0 0.0
        %535 = vmatpush1.msra.mxu0 0.0
        %536 = vmatprep.subr.mxu0 0.0
        %537 = vmatpush1.msra.mxu0 0.0
        %538 = vmatprep.subr.mxu0 0.0
        %539 = vmatpush1.msra.mxu0 0.0
        %540 = vmatprep.subr.mxu0 0.0
        %541 = vmatpush1.msra.mxu0 0.0
        %542 = vmatprep.subr.mxu0 0.0
        %543 = vmatpush1.msra.mxu0 0.0
        %544 = vmatprep.subr.mxu0 0.0
        %545 = vmatpush1.msra.mxu0 0.0
        %546 = vmatprep.subr.mxu0 0.0
        %547 = vmatpush1.msra.mxu0 0.0
        %548 = vmatprep.subr.mxu0 0.0
        %549 = vmatpush1.msra.mxu0 0.0
        %550 = vmatprep.subr.mxu0 0.0
        %551 = vmatpush1.msra.mxu0 0.0
        %552 = vmatprep.subr.mxu0 0.0
        %553 = vmatpush1.msra.mxu0 0.0
        %554 = vmatprep.subr.mxu0 0.0
        %555 = vmatpush1.msra.mxu0 0.0
        %556 = vmatprep.subr.mxu0 0.0
        %557 = vmatpush1.msra.mxu0 0.0
        %558 = vmatprep.subr.mxu0 0.0
        %559 = vmatpush1.msra.mxu0 0.0
        %560 = vmatprep.subr.mxu0 0.0
        %561 = vmatpush1.msra.mxu0 0.0
        %562 = vmatprep.subr.mxu0 0.0
        %563 = vmatpush1.msra.mxu0 0.0
        %564 = vmatprep.subr.mxu0 0.0
        %565 = vmatpush1.msra.mxu0 0.0
        %566 = vmatprep.subr.mxu0 0.0
        %567 = vmatpush1.msra.mxu0 0.0
        %568 = vmatprep.subr.mxu0 0.0
        %569 = vmatpush1.msra.mxu0 0.0
        %570 = vmatprep.subr.mxu0 0.0
        %571 = vmatpush1.msra.mxu0 0.0
        %572 = vmatprep.subr.mxu0 0.0
        %573 = vmatpush1.msra.mxu0 0.0
        %574 = vmatprep.mubr.f32.mxu0 0.0
        %575 = vmatmul.mubr.f32.gmra.mrb[0].mxu0 %v495
        %v576 = vpop.f32.mrb[0].mxu0
        %v577 = vadd.f32 %v476, %v576
        %v578 = vpop.f32.mrb[0].mxu0
        %579 = vmatprep.mubr.f32.mxu0 0.0
        %580 = vmatmul.mubr.f32.gmra.mrb[0].mxu0 %v498
        %v581 = vpop.f32.mrb[0].mxu0
        %v582 = vadd.f32 %v481, %v581
        %v583 = vpop.f32.mrb[0].mxu0
        %584 = vmatprep.mubr.f32.mxu0 0.0
        %585 = vmatmul.mubr.f32.gmra.mrb[0].mxu0 %v501
        %v586 = vpop.f32.mrb[0].mxu0
        %v587 = vadd.f32 %v486, %v586
        %v588 = vpop.f32.mrb[0].mxu0
        %589 = vmatprep.mubr.f32.mxu0 0.0
        %590 = vmatmul.mubr.f32.gmra.mrb[0].mxu0 %v504
        %v591 = vpop.f32.mrb[0].mxu0
        %v592 = vadd.f32 %v491, %v591
        %v593 = vpop.f32.mrb[0].mxu0
        %594 = vdwg.mxu0
        %v595 = vmax.f32 %v577, 0.0
        %v596 = vmax.f32 %v582, 0.0
        %v597 = vmax.f32 %v587, 0.0
        %v598 = vmax.f32 %v592, 0.0
        %v599 = vld [vmem:[%s3] sm:$0xff]
        %v600 = vld [vmem:[%s3 + $0x8] sm:$0xff]
        %v601 = vld [vmem:[%s3 + $0x10] sm:$0xff]
        %v602 = vld [vmem:[%s3 + $0x18] sm:$0x7]
        %v603 = vld [vmem:[%s4] sm:$0xff]
        %v604 = vld [vmem:[%s4 + $0x8] sm:$0xff]
        %v605 = vld [vmem:[%s4 + $0x10] sm:$0xff]
        %v606 = vld [vmem:[%s4 + $0x18] sm:$0x7]
        %608 = vset.pattern.permute.xlu0 0
        %609 = vperm.xlu0 %608, %v603
        %v610 = vpop.permute.xlu0 %609
        %613 = vset.pattern.permute.xlu0 0
        %614 = vperm.xlu0 %613, %v604
        %v615 = vpop.permute.xlu0 %614
        %618 = vset.pattern.permute.xlu0 0
        %619 = vperm.xlu0 %618, %v605
        %v620 = vpop.permute.xlu0 %619
        %623 = vset.pattern.permute.xlu0 0
        %624 = vperm.xlu0 %623, %v606
        %v625 = vpop.permute.xlu0 %624
        %vm627 = vcmask 220160
        %v629 = vsel %vm627, %v599, 0
        %v632 = vsel %vm627, %v600, 0
        %v635 = vsel %vm627, %v601, 0
        %v638 = vsel %vm627, %v602, 0
        %vm640 = vcmask 1042432
        %v642 = vsel %vm640, %v598, 0
        %644 = vmatprep.subr.mxu0 0.0
        %645 = vmatpush1.msra.mxu0 %v595
        %646 = vmatprep.subr.mxu0 0.0
        %647 = vmatpush1.msra.mxu0 %v596
        %648 = vmatprep.subr.mxu0 0.0
        %649 = vmatpush1.msra.mxu0 %v597
        %650 = vmatprep.subr.mxu0 0.0
        %651 = vmatpush1.msra.mxu0 %v642
        %652 = vmatprep.subr.mxu0 0.0
        %653 = vmatpush1.msra.mxu0 0.0
        %654 = vmatprep.subr.mxu0 0.0
        %655 = vmatpush1.msra.mxu0 0.0
        %656 = vmatprep.subr.mxu0 0.0
        %657 = vmatpush1.msra.mxu0 0.0
        %658 = vmatprep.subr.mxu0 0.0
        %659 = vmatpush1.msra.mxu0 0.0
        %660 = vmatprep.subr.mxu0 0.0
        %661 = vmatpush1.msra.mxu0 0.0
        %662 = vmatprep.subr.mxu0 0.0
        %663 = vmatpush1.msra.mxu0 0.0
        %664 = vmatprep.subr.mxu0 0.0
        %665 = vmatpush1.msra.mxu0 0.0
        %666 = vmatprep.subr.mxu0 0.0
        %667 = vmatpush1.msra.mxu0 0.0
        %668 = vmatprep.subr.mxu0 0.0
        %669 = vmatpush1.msra.mxu0 0.0
        %670 = vmatprep.subr.mxu0 0.0
        %671 = vmatpush1.msra.mxu0 0.0
        %672 = vmatprep.subr.mxu0 0.0
        %673 = vmatpush1.msra.mxu0 0.0
        %674 = vmatprep.subr.mxu0 0.0
        %675 = vmatpush1.msra.mxu0 0.0
        %676 = vmatprep.subr.mxu0 0.0
        %677 = vmatpush1.msra.mxu0 0.0
        %678 = vmatprep.subr.mxu0 0.0
        %679 = vmatpush1.msra.mxu0 0.0
        %680 = vmatprep.subr.mxu0 0.0
        %681 = vmatpush1.msra.mxu0 0.0
        %682 = vmatprep.subr.mxu0 0.0
        %683 = vmatpush1.msra.mxu0 0.0
        %684 = vmatprep.subr.mxu0 0.0
        %685 = vmatpush1.msra.mxu0 0.0
        %686 = vmatprep.subr.mxu0 0.0
        %687 = vmatpush1.msra.mxu0 0.0
        %688 = vmatprep.subr.mxu0 0.0
        %689 = vmatpush1.msra.mxu0 0.0
        %690 = vmatprep.subr.mxu0 0.0
        %691 = vmatpush1.msra.mxu0 0.0
        %692 = vmatprep.subr.mxu0 0.0
        %693 = vmatpush1.msra.mxu0 0.0
        %694 = vmatprep.subr.mxu0 0.0
        %695 = vmatpush1.msra.mxu0 0.0
        %696 = vmatprep.subr.mxu0 0.0
        %697 = vmatpush1.msra.mxu0 0.0
        %698 = vmatprep.subr.mxu0 0.0
        %699 = vmatpush1.msra.mxu0 0.0
        %700 = vmatprep.subr.mxu0 0.0
        %701 = vmatpush1.msra.mxu0 0.0
        %702 = vmatprep.subr.mxu0 0.0
        %703 = vmatpush1.msra.mxu0 0.0
        %704 = vmatprep.subr.mxu0 0.0
        %705 = vmatpush1.msra.mxu0 0.0
        %706 = vmatprep.subr.mxu0 0.0
        %707 = vmatpush1.msra.mxu0 0.0
        %708 = vmatprep.mubr.f32.mxu0 0.0
        %709 = vmatmul.mubr.f32.gmra.mrb[0].mxu0 %v629
        %v710 = vpop.f32.mrb[0].mxu0
        %v711 = vadd.f32 %v610, %v710
        %v712 = vpop.f32.mrb[0].mxu0
        %713 = vmatprep.mubr.f32.mxu0 0.0
        %714 = vmatmul.mubr.f32.gmra.mrb[0].mxu0 %v632
        %v715 = vpop.f32.mrb[0].mxu0
        %v716 = vadd.f32 %v615, %v715
        %v717 = vpop.f32.mrb[0].mxu0
        %718 = vmatprep.mubr.f32.mxu0 0.0
        %719 = vmatmul.mubr.f32.gmra.mrb[0].mxu0 %v635
        %v720 = vpop.f32.mrb[0].mxu0
        %v721 = vadd.f32 %v620, %v720
        %v722 = vpop.f32.mrb[0].mxu0
        %723 = vmatprep.mubr.f32.mxu0 0.0
        %724 = vmatmul.mubr.f32.gmra.mrb[0].mxu0 %v638
        %v725 = vpop.f32.mrb[0].mxu0
        %v726 = vadd.f32 %v625, %v725
        %v727 = vpop.f32.mrb[0].mxu0
        %728 = vdwg.mxu0
        %v729 = vmax.f32 %v711, 0.0
        %v730 = vmax.f32 %v716, 0.0
        %v731 = vmax.f32 %v721, 0.0
        %v732 = vmax.f32 %v726, 0.0
        %v733 = vld [vmem:[%s5] sm:$0xff]
        %v734 = vld [vmem:[%s5 + $0x8] sm:$0xff]
        %v735 = vld [vmem:[%s5 + $0x10] sm:$0xff]
        %v736 = vld [vmem:[%s5 + $0x18] sm:$0x7]
        %v737 = vld [vmem:[%s6] sm:$0xff]
        %v738 = vld [vmem:[%s6 + $0x8] sm:$0xff]
        %v739 = vld [vmem:[%s6 + $0x10] sm:$0xff]
        %v740 = vld [vmem:[%s6 + $0x18] sm:$0x7]
        %742 = vset.pattern.permute.xlu0 0
        %743 = vperm.xlu0 %742, %v737
        %v744 = vpop.permute.xlu0 %743
        %747 = vset.pattern.permute.xlu0 0
        %748 = vperm.xlu0 %747, %v738
        %v749 = vpop.permute.xlu0 %748
        %752 = vset.pattern.permute.xlu0 0
        %753 = vperm.xlu0 %752, %v739
        %v754 = vpop.permute.xlu0 %753
        %757 = vset.pattern.permute.xlu0 0
        %758 = vperm.xlu0 %757, %v740
        %v759 = vpop.permute.xlu0 %758
        %v762 = vsel %vm627, %v733, 0
        %v765 = vsel %vm627, %v734, 0
        %v768 = vsel %vm627, %v735, 0
        %v771 = vsel %vm627, %v736, 0
        %v774 = vsel %vm640, %v732, 0
        %776 = vmatprep.subr.mxu0 0.0
        %777 = vmatpush1.msra.mxu0 %v729
        %778 = vmatprep.subr.mxu0 0.0
        %779 = vmatpush1.msra.mxu0 %v730
        %780 = vmatprep.subr.mxu0 0.0
        %781 = vmatpush1.msra.mxu0 %v731
        %782 = vmatprep.subr.mxu0 0.0
        %783 = vmatpush1.msra.mxu0 %v774
        %784 = vmatprep.subr.mxu0 0.0
        %785 = vmatpush1.msra.mxu0 0.0
        %786 = vmatprep.subr.mxu0 0.0
        %787 = vmatpush1.msra.mxu0 0.0
        %788 = vmatprep.subr.mxu0 0.0
        %789 = vmatpush1.msra.mxu0 0.0
        %790 = vmatprep.subr.mxu0 0.0
        %791 = vmatpush1.msra.mxu0 0.0
        %792 = vmatprep.subr.mxu0 0.0
        %793 = vmatpush1.msra.mxu0 0.0
        %794 = vmatprep.subr.mxu0 0.0
        %795 = vmatpush1.msra.mxu0 0.0
        %796 = vmatprep.subr.mxu0 0.0
        %797 = vmatpush1.msra.mxu0 0.0
        %798 = vmatprep.subr.mxu0 0.0
        %799 = vmatpush1.msra.mxu0 0.0
        %800 = vmatprep.subr.mxu0 0.0
        %801 = vmatpush1.msra.mxu0 0.0
        %802 = vmatprep.subr.mxu0 0.0
        %803 = vmatpush1.msra.mxu0 0.0
        %804 = vmatprep.subr.mxu0 0.0
        %805 = vmatpush1.msra.mxu0 0.0
        %806 = vmatprep.subr.mxu0 0.0
        %807 = vmatpush1.msra.mxu0 0.0
        %808 = vmatprep.subr.mxu0 0.0
        %809 = vmatpush1.msra.mxu0 0.0
        %810 = vmatprep.subr.mxu0 0.0
        %811 = vmatpush1.msra.mxu0 0.0
        %812 = vmatprep.subr.mxu0 0.0
        %813 = vmatpush1.msra.mxu0 0.0
        %814 = vmatprep.subr.mxu0 0.0
        %815 = vmatpush1.msra.mxu0 0.0
        %816 = vmatprep.subr.mxu0 0.0
        %817 = vmatpush1.msra.mxu0 0.0
        %818 = vmatprep.subr.mxu0 0.0
        %819 = vmatpush1.msra.mxu0 0.0
        %820 = vmatprep.subr.mxu0 0.0
        %821 = vmatpush1.msra.mxu0 0.0
        %822 = vmatprep.subr.mxu0 0.0
        %823 = vmatpush1.msra.mxu0 0.0
        %824 = vmatprep.subr.mxu0 0.0
        %825 = vmatpush1.msra.mxu0 0.0
        %826 = vmatprep.subr.mxu0 0.0
        %827 = vmatpush1.msra.mxu0 0.0
        %828 = vmatprep.subr.mxu0 0.0
        %829 = vmatpush1.msra.mxu0 0.0
        %830 = vmatprep.subr.mxu0 0.0
        %831 = vmatpush1.msra.mxu0 0.0
        %832 = vmatprep.subr.mxu0 0.0
        %833 = vmatpush1.msra.mxu0 0.0
        %834 = vmatprep.subr.mxu0 0.0
        %835 = vmatpush1.msra.mxu0 0.0
        %836 = vmatprep.subr.mxu0 0.0
        %837 = vmatpush1.msra.mxu0 0.0
        %838 = vmatprep.subr.mxu0 0.0
        %839 = vmatpush1.msra.mxu0 0.0
        %840 = vmatprep.mubr.f32.mxu0 0.0
        %841 = vmatmul.mubr.f32.gmra.mrb[0].mxu0 %v762
        %v842 = vpop.f32.mrb[0].mxu0
        %v843 = vadd.f32 %v744, %v842
        %v844 = vpop.f32.mrb[0].mxu0
        %845 = vmatprep.mubr.f32.mxu0 0.0
        %846 = vmatmul.mubr.f32.gmra.mrb[0].mxu0 %v765
        %v847 = vpop.f32.mrb[0].mxu0
        %v848 = vadd.f32 %v749, %v847
        %v849 = vpop.f32.mrb[0].mxu0
        %850 = vmatprep.mubr.f32.mxu0 0.0
        %851 = vmatmul.mubr.f32.gmra.mrb[0].mxu0 %v768
        %v852 = vpop.f32.mrb[0].mxu0
        %v853 = vadd.f32 %v754, %v852
        %v854 = vpop.f32.mrb[0].mxu0
        %855 = vmatprep.mubr.f32.mxu0 0.0
        %856 = vmatmul.mubr.f32.gmra.mrb[0].mxu0 %v771
        %v857 = vpop.f32.mrb[0].mxu0
        %v858 = vadd.f32 %v759, %v857
        %v859 = vpop.f32.mrb[0].mxu0
        %860 = vdwg.mxu0
        %v861 = vmax.f32 %v843, 0.0
        %v862 = vmax.f32 %v848, 0.0
        %v863 = vmax.f32 %v853, 0.0
        %v864 = vmax.f32 %v858, 0.0
        %v865 = vld [vmem:[%s7] sm:$0xff]
        %v866 = vld [vmem:[%s7 + $0x8] sm:$0xff]
        %v867 = vld [vmem:[%s7 + $0x10] sm:$0xff]
        %v868 = vld [vmem:[%s7 + $0x18] sm:$0x7]
        %v869 = vld [vmem:[%s8] sm:$0xff]
        %v870 = vld [vmem:[%s8 + $0x8] sm:$0xff]
        %v871 = vld [vmem:[%s8 + $0x10] sm:$0xff]
        %v872 = vld [vmem:[%s8 + $0x18] sm:$0x7]
        %874 = vset.pattern.permute.xlu0 0
        %875 = vperm.xlu0 %874, %v869
        %v876 = vpop.permute.xlu0 %875
        %879 = vset.pattern.permute.xlu0 0
        %880 = vperm.xlu0 %879, %v870
        %v881 = vpop.permute.xlu0 %880
        %884 = vset.pattern.permute.xlu0 0
        %885 = vperm.xlu0 %884, %v871
        %v886 = vpop.permute.xlu0 %885
        %889 = vset.pattern.permute.xlu0 0
        %890 = vperm.xlu0 %889, %v872
        %v891 = vpop.permute.xlu0 %890
        %v894 = vsel %vm627, %v865, 0
        %v897 = vsel %vm627, %v866, 0
        %v900 = vsel %vm627, %v867, 0
        %v903 = vsel %vm627, %v868, 0
        %v906 = vsel %vm640, %v864, 0
        %908 = vmatprep.subr.mxu0 0.0
        %909 = vmatpush1.msra.mxu0 %v861
        %910 = vmatprep.subr.mxu0 0.0
        %911 = vmatpush1.msra.mxu0 %v862
        %912 = vmatprep.subr.mxu0 0.0
        %913 = vmatpush1.msra.mxu0 %v863
        %914 = vmatprep.subr.mxu0 0.0
        %915 = vmatpush1.msra.mxu0 %v906
        %916 = vmatprep.subr.mxu0 0.0
        %917 = vmatpush1.msra.mxu0 0.0
        %918 = vmatprep.subr.mxu0 0.0
        %919 = vmatpush1.msra.mxu0 0.0
        %920 = vmatprep.subr.mxu0 0.0
        %921 = vmatpush1.msra.mxu0 0.0
        %922 = vmatprep.subr.mxu0 0.0
        %923 = vmatpush1.msra.mxu0 0.0
        %924 = vmatprep.subr.mxu0 0.0
        %925 = vmatpush1.msra.mxu0 0.0
        %926 = vmatprep.subr.mxu0 0.0
        %927 = vmatpush1.msra.mxu0 0.0
        %928 = vmatprep.subr.mxu0 0.0
        %929 = vmatpush1.msra.mxu0 0.0
        %930 = vmatprep.subr.mxu0 0.0
        %931 = vmatpush1.msra.mxu0 0.0
        %932 = vmatprep.subr.mxu0 0.0
        %933 = vmatpush1.msra.mxu0 0.0
        %934 = vmatprep.subr.mxu0 0.0
        %935 = vmatpush1.msra.mxu0 0.0
        %936 = vmatprep.subr.mxu0 0.0
        %937 = vmatpush1.msra.mxu0 0.0
        %938 = vmatprep.subr.mxu0 0.0
        %939 = vmatpush1.msra.mxu0 0.0
        %940 = vmatprep.subr.mxu0 0.0
        %941 = vmatpush1.msra.mxu0 0.0
        %942 = vmatprep.subr.mxu0 0.0
        %943 = vmatpush1.msra.mxu0 0.0
        %944 = vmatprep.subr.mxu0 0.0
        %945 = vmatpush1.msra.mxu0 0.0
        %946 = vmatprep.subr.mxu0 0.0
        %947 = vmatpush1.msra.mxu0 0.0
        %948 = vmatprep.subr.mxu0 0.0
        %949 = vmatpush1.msra.mxu0 0.0
        %950 = vmatprep.subr.mxu0 0.0
        %951 = vmatpush1.msra.mxu0 0.0
        %952 = vmatprep.subr.mxu0 0.0
        %953 = vmatpush1.msra.mxu0 0.0
        %954 = vmatprep.subr.mxu0 0.0
        %955 = vmatpush1.msra.mxu0 0.0
        %956 = vmatprep.subr.mxu0 0.0
        %957 = vmatpush1.msra.mxu0 0.0
        %958 = vmatprep.subr.mxu0 0.0
        %959 = vmatpush1.msra.mxu0 0.0
        %960 = vmatprep.subr.mxu0 0.0
        %961 = vmatpush1.msra.mxu0 0.0
        %962 = vmatprep.subr.mxu0 0.0
        %963 = vmatpush1.msra.mxu0 0.0
        %964 = vmatprep.subr.mxu0 0.0
        %965 = vmatpush1.msra.mxu0 0.0
        %966 = vmatprep.subr.mxu0 0.0
        %967 = vmatpush1.msra.mxu0 0.0
        %968 = vmatprep.subr.mxu0 0.0
        %969 = vmatpush1.msra.mxu0 0.0
        %970 = vmatprep.subr.mxu0 0.0
        %971 = vmatpush1.msra.mxu0 0.0
        %972 = vmatprep.mubr.f32.mxu0 0.0
        %973 = vmatmul.mubr.f32.gmra.mrb[0].mxu0 %v894
        %v974 = vpop.f32.mrb[0].mxu0
        %v975 = vadd.f32 %v876, %v974
        %v976 = vpop.f32.mrb[0].mxu0
        %977 = vmatprep.mubr.f32.mxu0 0.0
        %978 = vmatmul.mubr.f32.gmra.mrb[0].mxu0 %v897
        %v979 = vpop.f32.mrb[0].mxu0
        %v980 = vadd.f32 %v881, %v979
        %v981 = vpop.f32.mrb[0].mxu0
        %982 = vmatprep.mubr.f32.mxu0 0.0
        %983 = vmatmul.mubr.f32.gmra.mrb[0].mxu0 %v900
        %v984 = vpop.f32.mrb[0].mxu0
        %v985 = vadd.f32 %v886, %v984
        %v986 = vpop.f32.mrb[0].mxu0
        %987 = vmatprep.mubr.f32.mxu0 0.0
        %988 = vmatmul.mubr.f32.gmra.mrb[0].mxu0 %v903
        %v989 = vpop.f32.mrb[0].mxu0
        %v990 = vadd.f32 %v891, %v989
        %v991 = vpop.f32.mrb[0].mxu0
        %992 = vdwg.mxu0
        %v993 = vmax.f32 %v975, 0.0
        %v994 = vmax.f32 %v980, 0.0
        %v995 = vmax.f32 %v985, 0.0
        %v996 = vmax.f32 %v990, 0.0
        %v997 = vld [vmem:[%s9] sm:$0xff]
        %v998 = vld [vmem:[%s9 + $0x8] sm:$0xff]
        %v999 = vld [vmem:[%s9 + $0x10] sm:$0xff]
        %v1000 = vld [vmem:[%s9 + $0x18] sm:$0x7]
        %v1001 = vld [vmem:[%s10] sm:$0xff]
        %v1002 = vld [vmem:[%s10 + $0x8] sm:$0xff]
        %v1003 = vld [vmem:[%s10 + $0x10] sm:$0xff]
        %v1004 = vld [vmem:[%s10 + $0x18] sm:$0x7]
        %v1006 = vsel %vm627, %v1001, 0
        %v1009 = vsel %vm627, %v1002, 0
        %v1012 = vsel %vm627, %v1003, 0
        %v1015 = vsel %vm627, %v1004, 0
        %v1018 = vsel %vm640, %v996, 0
        %1020 = vmatprep.subr.mxu0 0.0
        %1021 = vmatpush1.msra.mxu0 %v993
        %1022 = vmatprep.subr.mxu0 0.0
        %1023 = vmatpush1.msra.mxu0 %v994
        %1024 = vmatprep.subr.mxu0 0.0
        %1025 = vmatpush1.msra.mxu0 %v995
        %1026 = vmatprep.subr.mxu0 0.0
        %1027 = vmatpush1.msra.mxu0 %v1018
        %1028 = vmatprep.subr.mxu0 0.0
        %1029 = vmatpush1.msra.mxu0 0.0
        %1030 = vmatprep.subr.mxu0 0.0
        %1031 = vmatpush1.msra.mxu0 0.0
        %1032 = vmatprep.subr.mxu0 0.0
        %1033 = vmatpush1.msra.mxu0 0.0
        %1034 = vmatprep.subr.mxu0 0.0
        %1035 = vmatpush1.msra.mxu0 0.0
        %1036 = vmatprep.subr.mxu0 0.0
        %1037 = vmatpush1.msra.mxu0 0.0
        %1038 = vmatprep.subr.mxu0 0.0
        %1039 = vmatpush1.msra.mxu0 0.0
        %1040 = vmatprep.subr.mxu0 0.0
        %1041 = vmatpush1.msra.mxu0 0.0
        %1042 = vmatprep.subr.mxu0 0.0
        %1043 = vmatpush1.msra.mxu0 0.0
        %1044 = vmatprep.subr.mxu0 0.0
        %1045 = vmatpush1.msra.mxu0 0.0
        %1046 = vmatprep.subr.mxu0 0.0
        %1047 = vmatpush1.msra.mxu0 0.0
        %1048 = vmatprep.subr.mxu0 0.0
        %1049 = vmatpush1.msra.mxu0 0.0
        %1050 = vmatprep.subr.mxu0 0.0
        %1051 = vmatpush1.msra.mxu0 0.0
        %1052 = vmatprep.subr.mxu0 0.0
        %1053 = vmatpush1.msra.mxu0 0.0
        %1054 = vmatprep.subr.mxu0 0.0
        %1055 = vmatpush1.msra.mxu0 0.0
        %1056 = vmatprep.subr.mxu0 0.0
        %1057 = vmatpush1.msra.mxu0 0.0
        %1058 = vmatprep.subr.mxu0 0.0
        %1059 = vmatpush1.msra.mxu0 0.0
        %1060 = vmatprep.subr.mxu0 0.0
        %1061 = vmatpush1.msra.mxu0 0.0
        %1062 = vmatprep.subr.mxu0 0.0
        %1063 = vmatpush1.msra.mxu0 0.0
        %1064 = vmatprep.subr.mxu0 0.0
        %1065 = vmatpush1.msra.mxu0 0.0
        %1066 = vmatprep.subr.mxu0 0.0
        %1067 = vmatpush1.msra.mxu0 0.0
        %1068 = vmatprep.subr.mxu0 0.0
        %1069 = vmatpush1.msra.mxu0 0.0
        %1070 = vmatprep.subr.mxu0 0.0
        %1071 = vmatpush1.msra.mxu0 0.0
        %1072 = vmatprep.subr.mxu0 0.0
        %1073 = vmatpush1.msra.mxu0 0.0
        %1074 = vmatprep.subr.mxu0 0.0
        %1075 = vmatpush1.msra.mxu0 0.0
        %1076 = vmatprep.subr.mxu0 0.0
        %1077 = vmatpush1.msra.mxu0 0.0
        %1078 = vmatprep.subr.mxu0 0.0
        %1079 = vmatpush1.msra.mxu0 0.0
        %1080 = vmatprep.subr.mxu0 0.0
        %1081 = vmatpush1.msra.mxu0 0.0
        %1082 = vmatprep.subr.mxu0 0.0
        %1083 = vmatpush1.msra.mxu0 0.0
        %1084 = vmatprep.mubr.f32.mxu0 0.0
        %1085 = vmatmul.mubr.f32.gmra.mrb[0].mxu0 %v1006
        %v1086 = vpop.f32.mrb[0].mxu0
        %v1087 = vadd.f32 0.0, %v1086
        %v1088 = vpop.f32.mrb[0].mxu0
        %1089 = vmatprep.mubr.f32.mxu0 0.0
        %1090 = vmatmul.mubr.f32.gmra.mrb[0].mxu0 %v1009
        %v1091 = vpop.f32.mrb[0].mxu0
        %v1092 = vadd.f32 0.0, %v1091
        %v1093 = vpop.f32.mrb[0].mxu0
        %1094 = vmatprep.mubr.f32.mxu0 0.0
        %1095 = vmatmul.mubr.f32.gmra.mrb[0].mxu0 %v1012
        %v1096 = vpop.f32.mrb[0].mxu0
        %v1097 = vadd.f32 0.0, %v1096
        %v1098 = vpop.f32.mrb[0].mxu0
        %1099 = vmatprep.mubr.f32.mxu0 0.0
        %1100 = vmatmul.mubr.f32.gmra.mrb[0].mxu0 %v1015
        %v1101 = vpop.f32.mrb[0].mxu0
        %v1102 = vadd.f32 0.0, %v1101
        %v1103 = vpop.f32.mrb[0].mxu0
        %1104 = vdwg.mxu0
        %v1106 = vsel %vm493, %v997, 0
        %v1109 = vsel %vm493, %v998, 0
        %v1112 = vsel %vm493, %v999, 0
        %v1115 = vsel %vm493, %v1000, 0
        %1117 = vmatprep.subr.mxu0 0.0
        %1118 = vmatpush1.msra.mxu0 %v508
        %1119 = vmatprep.subr.mxu0 0.0
        %1120 = vmatpush1.msra.mxu0 0.0
        %1121 = vmatprep.subr.mxu0 0.0
        %1122 = vmatpush1.msra.mxu0 0.0
        %1123 = vmatprep.subr.mxu0 0.0
        %1124 = vmatpush1.msra.mxu0 0.0
        %1125 = vmatprep.subr.mxu0 0.0
        %1126 = vmatpush1.msra.mxu0 0.0
        %1127 = vmatprep.subr.mxu0 0.0
        %1128 = vmatpush1.msra.mxu0 0.0
        %1129 = vmatprep.subr.mxu0 0.0
        %1130 = vmatpush1.msra.mxu0 0.0
        %1131 = vmatprep.subr.mxu0 0.0
        %1132 = vmatpush1.msra.mxu0 0.0
        %1133 = vmatprep.subr.mxu0 0.0
        %1134 = vmatpush1.msra.mxu0 0.0
        %1135 = vmatprep.subr.mxu0 0.0
        %1136 = vmatpush1.msra.mxu0 0.0
        %1137 = vmatprep.subr.mxu0 0.0
        %1138 = vmatpush1.msra.mxu0 0.0
        %1139 = vmatprep.subr.mxu0 0.0
        %1140 = vmatpush1.msra.mxu0 0.0
        %1141 = vmatprep.subr.mxu0 0.0
        %1142 = vmatpush1.msra.mxu0 0.0
        %1143 = vmatprep.subr.mxu0 0.0
        %1144 = vmatpush1.msra.mxu0 0.0
        %1145 = vmatprep.subr.mxu0 0.0
        %1146 = vmatpush1.msra.mxu0 0.0
        %1147 = vmatprep.subr.mxu0 0.0
        %1148 = vmatpush1.msra.mxu0 0.0
        %1149 = vmatprep.subr.mxu0 0.0
        %1150 = vmatpush1.msra.mxu0 0.0
        %1151 = vmatprep.subr.mxu0 0.0
        %1152 = vmatpush1.msra.mxu0 0.0
        %1153 = vmatprep.subr.mxu0 0.0
        %1154 = vmatpush1.msra.mxu0 0.0
        %1155 = vmatprep.subr.mxu0 0.0
        %1156 = vmatpush1.msra.mxu0 0.0
        %1157 = vmatprep.subr.mxu0 0.0
        %1158 = vmatpush1.msra.mxu0 0.0
        %1159 = vmatprep.subr.mxu0 0.0
        %1160 = vmatpush1.msra.mxu0 0.0
        %1161 = vmatprep.subr.mxu0 0.0
        %1162 = vmatpush1.msra.mxu0 0.0
        %1163 = vmatprep.subr.mxu0 0.0
        %1164 = vmatpush1.msra.mxu0 0.0
        %1165 = vmatprep.subr.mxu0 0.0
        %1166 = vmatpush1.msra.mxu0 0.0
        %1167 = vmatprep.subr.mxu0 0.0
        %1168 = vmatpush1.msra.mxu0 0.0
        %1169 = vmatprep.subr.mxu0 0.0
        %1170 = vmatpush1.msra.mxu0 0.0
        %1171 = vmatprep.subr.mxu0 0.0
        %1172 = vmatpush1.msra.mxu0 0.0
        %1173 = vmatprep.subr.mxu0 0.0
        %1174 = vmatpush1.msra.mxu0 0.0
        %1175 = vmatprep.subr.mxu0 0.0
        %1176 = vmatpush1.msra.mxu0 0.0
        %1177 = vmatprep.subr.mxu0 0.0
        %1178 = vmatpush1.msra.mxu0 0.0
        %1179 = vmatprep.subr.mxu0 0.0
        %1180 = vmatpush1.msra.mxu0 0.0
        %1181 = vmatprep.mubr.f32.mxu0 0.0
        %1182 = vmatmul.mubr.f32.gmra.mrb[0].mxu0 %v1106
        %v1183 = vpop.f32.mrb[0].mxu0
        %v1184 = vadd.f32 %v1087, %v1183
        %v1185 = vpop.f32.mrb[0].mxu0
        %1186 = vmatprep.mubr.f32.mxu0 0.0
        %1187 = vmatmul.mubr.f32.gmra.mrb[0].mxu0 %v1109
        %v1188 = vpop.f32.mrb[0].mxu0
        %v1189 = vadd.f32 %v1092, %v1188
        %v1190 = vpop.f32.mrb[0].mxu0
        %1191 = vmatprep.mubr.f32.mxu0 0.0
        %1192 = vmatmul.mubr.f32.gmra.mrb[0].mxu0 %v1112
        %v1193 = vpop.f32.mrb[0].mxu0
        %v1194 = vadd.f32 %v1097, %v1193
        %v1195 = vpop.f32.mrb[0].mxu0
        %1196 = vmatprep.mubr.f32.mxu0 0.0
        %1197 = vmatmul.mubr.f32.gmra.mrb[0].mxu0 %v1115
        %v1198 = vpop.f32.mrb[0].mxu0
        %v1199 = vadd.f32 %v1102, %v1198
        %v1200 = vpop.f32.mrb[0].mxu0
        %1201 = vdwg.mxu0
        %v1202 = vld [vmem:[%s11] sm:$0xff]
        %v1203 = vld [vmem:[%s11 + $0x8] sm:$0xff]
        %v1204 = vld [vmem:[%s11 + $0x10] sm:$0xff]
        %v1205 = vld [vmem:[%s11 + $0x18] sm:$0x7]
        %1207 = vset.pattern.permute.xlu0 0
        %1208 = vperm.xlu0 %1207, %v1202
        %v1209 = vpop.permute.xlu0 %1208
        %1212 = vset.pattern.permute.xlu0 0
        %1213 = vperm.xlu0 %1212, %v1203
        %v1214 = vpop.permute.xlu0 %1213
        %1217 = vset.pattern.permute.xlu0 0
        %1218 = vperm.xlu0 %1217, %v1204
        %v1219 = vpop.permute.xlu0 %1218
        %1222 = vset.pattern.permute.xlu0 0
        %1223 = vperm.xlu0 %1222, %v1205
        %v1224 = vpop.permute.xlu0 %1223
        %v1226 = vadd.f32 %v1184, %v1209
        %v1227 = vadd.f32 %v1189, %v1214
        %v1228 = vadd.f32 %v1194, %v1219
        %v1229 = vadd.f32 %v1199, %v1224
        %v1230 = vmax.f32 %v1226, 0.0
        %v1231 = vmax.f32 %v1227, 0.0
        %v1232 = vmax.f32 %v1228, 0.0
        %v1233 = vmax.f32 %v1229, 0.0
        %v1234 = vld [vmem:[%s12] sm:$0xff]
        %v1235 = vld [vmem:[%s12 + $0x8] sm:$0xff]
        %v1236 = vld [vmem:[%s12 + $0x10] sm:$0xff]
        %v1237 = vld [vmem:[%s12 + $0x18] sm:$0x7]
        %1239 = vset.pattern.permute.xlu0 0
        %1240 = vperm.xlu0 %1239, %v1234
        %v1241 = vpop.permute.xlu0 %1240
        %1244 = vset.pattern.permute.xlu0 0
        %1245 = vperm.xlu0 %1244, %v1235
        %v1246 = vpop.permute.xlu0 %1245
        %1249 = vset.pattern.permute.xlu0 0
        %1250 = vperm.xlu0 %1249, %v1236
        %v1251 = vpop.permute.xlu0 %1250
        %1254 = vset.pattern.permute.xlu0 0
        %1255 = vperm.xlu0 %1254, %v1237
        %v1256 = vpop.permute.xlu0 %1255
        %v1258 = vmul.f32 %v1230, %v1241
        %v1259 = vmul.f32 %v1231, %v1246
        %v1260 = vmul.f32 %v1232, %v1251
        %v1261 = vmul.f32 %v1233, %v1256
        %v1262 = vadd.f32 %v1258, %v1259
        %v1263 = vadd.f32 %v1262, %v1260
        %v1264 = vsel %vm640, %v1261, 0.0
        %v1265 = vadd.f32 %v1263, %v1264
        %v1266 = vrot.slane %v1265, 4
        %v1267 = vadd.f32 %v1265, %v1266
        %v1268 = vrot.slane %v1267, 2
        %v1269 = vadd.f32 %v1267, %v1268
        %v1270 = vrot.slane %v1269, 1
        %v1271 = vadd.f32 %v1269, %v1270
        %v1272 = vld [vmem:[#allocation2] sm:$0x1]
        %1274 = vset.pattern.permute.xlu0 0
        %1275 = vperm.xlu0 %1274, %v1272
        %v1276 = vpop.permute.xlu0 %1275
        %v1278 = vlaneseq
        %v1279 = vshrl.u32 %v1278, 7
        %v1280 = vsub.s32 0, %v1279
        %v1281 = vrot.slane %v1276, %v1280
        %v1282 = vadd.f32 %v1271, %v1281
        %1283 = vst [vmem:[%s459] sm:$0x1] %v1282
        %s1284 = sand.u32 %s337, 1
        %s1285 = scalar_lea.sflag [#allocation4], %s1284
        %s1286 = sand.u32 %s337, 1
        %s1287 = scalar_lea.vmem [#allocation3], %s1286
        // Predicated region
        $region77: #{nn_forward.1} parent=75 // pred_check
          %p1288 = pneg %p347
        $region78: #{nn_forward.1} parent=75 // pred_check_branch
          %1290 = sbr.rel (%p1288) target = $region80
        $region79: #{nn_forward.1} parent=75 // pred_region
          %s1292 = ssub.s32 16, 16
          %1293 = vsyncadd %s1285, %s1292
          %s1294 = smul.addr %s30, 16
          %s1295 = scalar_lea.hbm %s14, %s1294
          %s1297 = sshll.u32 %s1287, 4
          %s1298 = int_to_ptr.vmem [resolvable:$true] %s1297
          %1300 = dma.vmem_to_hbm [thread:$0]  %s1298, 16, %s1295, %s1285
        $region80: #{nn_forward.1} parent=75 // pred_fallthru
          _
      $region76: #{nn_forward.1} parent=5 // pred_fallthru
        _
      %p1301 = scmp.le.s32.totalorder 2, %s25
      // Predicated region
      $region81: #{nn_forward.1} parent=5 // pred_check
        %p1302 = pneg %p1301
      $region82: #{nn_forward.1} parent=5 // pred_check_branch
        %1304 = sbr.rel (%p1302) target = $region84
      $region83: #{nn_forward.1} parent=5 // pred_region
        %s1305 = ssub.s32 %s25, 2
        // Predicated region
        $region85: #{nn_forward.1} parent=83 // pred_check
          %p1306 = pneg %p353
        $region86: #{nn_forward.1} parent=83 // pred_check_branch
          %1308 = sbr.rel (%p1306) target = $region88
        $region87: #{nn_forward.1} parent=83 // pred_region
          %s1309 = sand.u32 %s338, 1
          %s1310 = scalar_lea.sflag [#allocation4], %s1309
          %s1311 = sand.u32 %s338, 1
          %s1312 = scalar_lea.vmem [#allocation3], %s1311
          %1313 = dma.done %s1310, 16
        $region88: #{nn_forward.1} parent=83 // pred_fallthru
          _
      $region84: #{nn_forward.1} parent=5 // pred_fallthru
        _
    $region6: #{nn_forward.1} parent=1 // loop_footer
      %s29 = sadd.s32 1, %s25
    $region7: #{nn_forward.1} parent=1 // loop_footer_branch
      %24 = sbr.rel target = $region3
    $region8: #{nn_forward.1} parent=1 // loop_exit
      _
    %1314 = vsyncpa [#allocation4], 1
    %s1315 = scalar_lea.sflag [#allocation4], 1
    %1316 = vsyncpa %s1315, 1

</llo_original>
